<compile_context>
chip_gen: v7x
topology: tpu7x:2x2x1
jax: 0.10.0
libtpu: 0.0.40
codegen_flags: <defaults>
</compile_context>

<pallas_src>
import jax
import jax.numpy as jnp
from jax.experimental import pallas as pl
from jax.experimental.pallas import tpu as pltpu

_LANES = 128
_SUBLANE_MULT = 32  # keeps (tile_rows, 128) blocks legal for f32/bf16/int8


def _cdiv(a, b):
    return -(-a // b)


def _round_up(x, m):
    return _cdiv(x, m) * m


def _mse_sums_kernel(pred_ref, tgt_ref, mask_ref,
                     loss_out_ref, mask_out_ref,
                     loss_acc, mask_acc):
    """Per-core partial sums of mask*(pred-tgt)^2 and mask.

    grid = (num_cores, n_tiles); axis 0 is 'parallel' (one output block per
    core), axis 1 is the streaming reduction.  Accumulation stays vreg-shaped
    (8,128) in VMEM scratch; outputs are written once at the last tile.
    """
    t = pl.program_id(1)

    @pl.when(t == 0)
    def _():
        loss_acc[...] = jnp.zeros_like(loss_acc)
        mask_acc[...] = jnp.zeros_like(mask_acc)

    pred = pred_ref[...].astype(jnp.float32)
    tgt = tgt_ref[...].astype(jnp.float32)
    msk = mask_ref[...].astype(jnp.float32)

    res = pred - tgt
    sq = msk * res * res

    # (tile_rows, 128) -> (tile_rows//8, 8, 128); summing axis 0 is pure
    # elementwise VPU adds of vreg-shaped slabs (no per-step XLU reduce,
    # no masked (1,1) scalar stores).
    loss_acc[...] += jnp.sum(sq.reshape(-1, 8, _LANES), axis=0)
    mask_acc[...] += jnp.sum(msk.reshape(-1, 8, _LANES), axis=0)

    @pl.when(t == pl.num_programs(1) - 1)
    def _():
        loss_out_ref[...] = loss_acc[...].reshape(1, 8, _LANES)
        mask_out_ref[...] = mask_acc[...].reshape(1, 8, _LANES)


def mse_loss_batch_based(prediction, target, mask, *,
                         max_tile_rows=2048, num_cores=2):
    """MiDaS MSELoss, 'batch-based' reduction.

    loss = sum_b sum_hw(mask * (pred - tgt)^2) / (2 * sum(mask)),  0 if the
    divisor is 0.  Inputs may be any floating/integer dtype; no host-side
    up-cast is performed.
    """
    assert prediction.shape == target.shape == mask.shape
    total = int(prediction.size)

    pred = prediction.reshape(-1)
    tgt = target.reshape(-1)
    msk = mask.reshape(-1)

    # Lane-dense retile: (rows, 128), rows split evenly over cores and tiles.
    rows_needed = _cdiv(total, _LANES)
    rows_per_core = _round_up(_cdiv(rows_needed, num_cores), _SUBLANE_MULT)
    n_tiles = max(1, _cdiv(rows_per_core, max_tile_rows))
    tile_rows = _round_up(_cdiv(rows_per_core, n_tiles), _SUBLANE_MULT)
    rows_per_core = n_tiles * tile_rows
    rows_total = rows_per_core * num_cores
    padded = rows_total * _LANES

    pad = padded - total
    if pad:
        # Zero padding contributes 0 to both sums (mask == 0 there).
        pred = jnp.pad(pred, (0, pad))
        tgt = jnp.pad(tgt, (0, pad))
        msk = jnp.pad(msk, (0, pad))

    pred = pred.reshape(rows_total, _LANES)
    tgt = tgt.reshape(rows_total, _LANES)
    msk = msk.reshape(rows_total, _LANES)

    def in_map(c, t):
        return (c * n_tiles + t, 0)

    def out_map(c, t):
        return (c, 0, 0)

    loss_parts, mask_parts = pl.pallas_call(
        _mse_sums_kernel,
        out_shape=(
            jax.ShapeDtypeStruct((num_cores, 8, _LANES), jnp.float32),
            jax.ShapeDtypeStruct((num_cores, 8, _LANES), jnp.float32),
        ),
        grid_spec=pltpu.PrefetchScalarGridSpec(
            num_scalar_prefetch=0,
            grid=(num_cores, n_tiles),
            in_specs=[
                pl.BlockSpec((tile_rows, _LANES), in_map),
                pl.BlockSpec((tile_rows, _LANES), in_map),
                pl.BlockSpec((tile_rows, _LANES), in_map),
            ],
            out_specs=[
                pl.BlockSpec((1, 8, _LANES), out_map),
                pl.BlockSpec((1, 8, _LANES), out_map),
            ],
            scratch_shapes=[
                pltpu.VMEM((8, _LANES), jnp.float32),
                pltpu.VMEM((8, _LANES), jnp.float32),
            ],
        ),
        compiler_params=pltpu.CompilerParams(
            dimension_semantics=("parallel", "arbitrary"),
        ),
    )(pred, tgt, msk)

    loss_sum = jnp.sum(loss_parts)
    mask_sum = jnp.sum(mask_parts)
    divisor = 2.0 * mask_sum
    safe_divisor = jnp.where(divisor == 0, 1.0, divisor)
    return jnp.where(divisor == 0, 0.0, loss_sum / safe_divisor)


# TODO(synk): 'image-based' reduction (per-image normalization + mean) not
# implemented; the module default is 'batch-based', which is what's above.


def _reference_mse_loss(prediction, target, mask):
    p = prediction.astype(jnp.float32)
    t = target.astype(jnp.float32)
    m = mask.astype(jnp.float32)
    M = jnp.sum(m, axis=(1, 2))
    res = p - t
    image_loss = jnp.sum(m * res * res, axis=(1, 2))
    divisor = jnp.sum(2.0 * M)
    safe = jnp.where(divisor == 0, 1.0, divisor)
    return jnp.where(divisor == 0, 0.0, jnp.sum(image_loss) / safe)


if __name__ == "__main__":
    key = jax.random.PRNGKey(0)
    k1, k2, k3 = jax.random.split(key, 3)

    B, H, W = 2, 16, 16
    prediction = jax.random.normal(k1, (B, H, W), dtype=jnp.float32)
    target = jax.random.normal(k2, (B, H, W), dtype=jnp.float32)
    # binary-ish validity mask, as in MiDaS
    mask = (jax.random.uniform(k3, (B, H, W)) > 0.3).astype(jnp.float32)

    out = mse_loss_batch_based(prediction, target, mask)
    out = jax.block_until_ready(out)

    ref = _reference_mse_loss(prediction, target, mask)
    assert jnp.allclose(out, ref, rtol=1e-5, atol=1e-6), (out, ref)

    print("KERNEL_OK")
</pallas_src>

<mosaic_0001>
module attributes {stable_mosaic.version = 11 : i64} {
  func.func @_mse_sums_kernel(%arg0: i32, %arg1: i32, %arg2: memref<32x128xf32, #tpu.memory_space<vmem>>, %arg3: memref<32x128xf32, #tpu.memory_space<vmem>>, %arg4: memref<32x128xf32, #tpu.memory_space<vmem>>, %arg5: memref<1x8x128xf32, #tpu.memory_space<vmem>>, %arg6: memref<1x8x128xf32, #tpu.memory_space<vmem>>, %arg7: memref<8x128xf32, #tpu.memory_space<vmem>>, %arg8: memref<8x128xf32, #tpu.memory_space<vmem>>) attributes {dimension_semantics = [#tpu.dimension_semantics<parallel>, #tpu.dimension_semantics<arbitrary>], iteration_bounds = array<i64: 2, 1>, scalar_prefetch = 0 : i64, scratch_operands = 2 : i64, tpu.core_type = #tpu.core_type<tc>, window_params = [{transform_indices = @transform_0, window_bounds = array<i64: 32, 128>}, {transform_indices = @transform_1, window_bounds = array<i64: 32, 128>}, {transform_indices = @transform_2, window_bounds = array<i64: 32, 128>}, {transform_indices = @transform_3, window_bounds = array<i64: 1, 8, 128>}, {transform_indices = @transform_4, window_bounds = array<i64: 1, 8, 128>}]} {
    %c0_i32 = arith.constant 0 : i32
    %0 = arith.cmpi eq, %arg1, %c0_i32 : i32
    %1 = arith.extui %0 : i1 to i32
    %c0_i32_0 = arith.constant 0 : i32
    %2 = arith.cmpi ne, %1, %c0_i32_0 : i32
    scf.if %2 {
      %cst_17 = arith.constant 0.000000e+00 : f32
      %22 = vector.broadcast %cst_17 : f32 to vector<8x128xf32>
      %c0_18 = arith.constant 0 : index
      %c0_19 = arith.constant 0 : index
      %23 = vector.load %arg7[%c0_18, %c0_19] : memref<8x128xf32, #tpu.memory_space<vmem>>, vector<8x128xf32>
      tpu.vector_store %arg7[%c0_18, %c0_19], %22 {strides = array<i32>} : memref<8x128xf32, #tpu.memory_space<vmem>>, vector<8x128xf32>,
      %cst_20 = arith.constant 0.000000e+00 : f32
      %24 = vector.broadcast %cst_20 : f32 to vector<8x128xf32>
      %c0_21 = arith.constant 0 : index
      %c0_22 = arith.constant 0 : index
      %25 = vector.load %arg8[%c0_21, %c0_22] : memref<8x128xf32, #tpu.memory_space<vmem>>, vector<8x128xf32>
      tpu.vector_store %arg8[%c0_21, %c0_22], %24 {strides = array<i32>} : memref<8x128xf32, #tpu.memory_space<vmem>>, vector<8x128xf32>,
    } else {
    }
    %c0 = arith.constant 0 : index
    %c0_1 = arith.constant 0 : index
    %3 = vector.load %arg2[%c0, %c0_1] : memref<32x128xf32, #tpu.memory_space<vmem>>, vector<32x128xf32>
    %c0_2 = arith.constant 0 : index
    %c0_3 = arith.constant 0 : index
    %4 = vector.load %arg3[%c0_2, %c0_3] : memref<32x128xf32, #tpu.memory_space<vmem>>, vector<32x128xf32>
    %c0_4 = arith.constant 0 : index
    %c0_5 = arith.constant 0 : index
    %5 = vector.load %arg4[%c0_4, %c0_5] : memref<32x128xf32, #tpu.memory_space<vmem>>, vector<32x128xf32>
    %6 = arith.subf %3, %4 : vector<32x128xf32>
    %7 = arith.mulf %5, %6 : vector<32x128xf32>
    %8 = arith.mulf %7, %6 : vector<32x128xf32>
    %c0_6 = arith.constant 0 : index
    %c0_7 = arith.constant 0 : index
    %9 = vector.load %arg7[%c0_6, %c0_7] : memref<8x128xf32, #tpu.memory_space<vmem>>, vector<8x128xf32>
    %10 = vector.shape_cast %8 : vector<32x128xf32> to vector<4x8x128xf32>
    %cst = arith.constant dense<0.000000e+00> : vector<8x128xf32>
    %11 = vector.multi_reduction <add>, %10, %cst [0] : vector<4x8x128xf32> to vector<8x128xf32>
    %12 = arith.addf %9, %11 : vector<8x128xf32>
    %c0_8 = arith.constant 0 : index
    %c0_9 = arith.constant 0 : index
    %13 = vector.load %arg7[%c0_8, %c0_9] : memref<8x128xf32, #tpu.memory_space<vmem>>, vector<8x128xf32>
    tpu.vector_store %arg7[%c0_8, %c0_9], %12 {strides = array<i32>} : memref<8x128xf32, #tpu.memory_space<vmem>>, vector<8x128xf32>,
    %c0_10 = arith.constant 0 : index
    %c0_11 = arith.constant 0 : index
    %14 = vector.load %arg8[%c0_10, %c0_11] : memref<8x128xf32, #tpu.memory_space<vmem>>, vector<8x128xf32>
    %15 = vector.shape_cast %5 : vector<32x128xf32> to vector<4x8x128xf32>
    %cst_12 = arith.constant dense<0.000000e+00> : vector<8x128xf32>
    %16 = vector.multi_reduction <add>, %15, %cst_12 [0] : vector<4x8x128xf32> to vector<8x128xf32>
    %17 = arith.addf %14, %16 : vector<8x128xf32>
    %c0_13 = arith.constant 0 : index
    %c0_14 = arith.constant 0 : index
    %18 = vector.load %arg8[%c0_13, %c0_14] : memref<8x128xf32, #tpu.memory_space<vmem>>, vector<8x128xf32>
    tpu.vector_store %arg8[%c0_13, %c0_14], %17 {strides = array<i32>} : memref<8x128xf32, #tpu.memory_space<vmem>>, vector<8x128xf32>,
    %c0_i32_15 = arith.constant 0 : i32
    %19 = arith.cmpi eq, %arg1, %c0_i32_15 : i32
    %20 = arith.extui %19 : i1 to i32
    %c0_i32_16 = arith.constant 0 : i32
    %21 = arith.cmpi ne, %20, %c0_i32_16 : i32
    scf.if %21 {
      %c0_17 = arith.constant 0 : index
      %c0_18 = arith.constant 0 : index
      %22 = vector.load %arg7[%c0_17, %c0_18] : memref<8x128xf32, #tpu.memory_space<vmem>>, vector<8x128xf32>
      %23 = vector.shape_cast %22 : vector<8x128xf32> to vector<1x8x128xf32>
      %c0_19 = arith.constant 0 : index
      %c0_20 = arith.constant 0 : index
      %c0_21 = arith.constant 0 : index
      %24 = vector.load %arg5[%c0_19, %c0_20, %c0_21] : memref<1x8x128xf32, #tpu.memory_space<vmem>>, vector<1x8x128xf32>
      tpu.vector_store %arg5[%c0_19, %c0_20, %c0_21], %23 {strides = array<i32>} : memref<1x8x128xf32, #tpu.memory_space<vmem>>, vector<1x8x128xf32>,
      %c0_22 = arith.constant 0 : index
      %c0_23 = arith.constant 0 : index
      %25 = vector.load %arg8[%c0_22, %c0_23] : memref<8x128xf32, #tpu.memory_space<vmem>>, vector<8x128xf32>
      %26 = vector.shape_cast %25 : vector<8x128xf32> to vector<1x8x128xf32>
      %c0_24 = arith.constant 0 : index
      %c0_25 = arith.constant 0 : index
      %c0_26 = arith.constant 0 : index
      %27 = vector.load %arg6[%c0_24, %c0_25, %c0_26] : memref<1x8x128xf32, #tpu.memory_space<vmem>>, vector<1x8x128xf32>
      tpu.vector_store %arg6[%c0_24, %c0_25, %c0_26], %26 {strides = array<i32>} : memref<1x8x128xf32, #tpu.memory_space<vmem>>, vector<1x8x128xf32>,
    } else {
    }
    return
  }
  func.func @transform_0(%arg0: i32, %arg1: i32) -> (i32, i32) {
    %c1_i32 = arith.constant 1 : i32
    %0 = arith.muli %arg0, %c1_i32 : i32
    %1 = arith.addi %0, %arg1 : i32
    %c0_i32 = arith.constant 0 : i32
    %c0_i32_0 = arith.constant 0 : i32
    return %1, %c0_i32 : i32, i32
  }
  func.func @transform_1(%arg0: i32, %arg1: i32) -> (i32, i32) {
    %c1_i32 = arith.constant 1 : i32
    %0 = arith.muli %arg0, %c1_i32 : i32
    %1 = arith.addi %0, %arg1 : i32
    %c0_i32 = arith.constant 0 : i32
    %c0_i32_0 = arith.constant 0 : i32
    return %1, %c0_i32 : i32, i32
  }
  func.func @transform_2(%arg0: i32, %arg1: i32) -> (i32, i32) {
    %c1_i32 = arith.constant 1 : i32
    %0 = arith.muli %arg0, %c1_i32 : i32
    %1 = arith.addi %0, %arg1 : i32
    %c0_i32 = arith.constant 0 : i32
    %c0_i32_0 = arith.constant 0 : i32
    return %1, %c0_i32 : i32, i32
  }
  func.func @transform_3(%arg0: i32, %arg1: i32) -> (i32, i32, i32) {
    %c0_i32 = arith.constant 0 : i32
    %c0_i32_0 = arith.constant 0 : i32
    %c0_i32_1 = arith.constant 0 : i32
    return %arg0, %c0_i32, %c0_i32_0 : i32, i32, i32
  }
  func.func @transform_4(%arg0: i32, %arg1: i32) -> (i32, i32, i32) {
    %c0_i32 = arith.constant 0 : i32
    %c0_i32_0 = arith.constant 0 : i32
    %c0_i32_1 = arith.constant 0 : i32
    return %arg0, %c0_i32, %c0_i32_0 : i32, i32, i32
  }
}

</mosaic_0001>

<llo_original>
// kernel: tpu_custom_call.1
$region0: #{tpu_custom_call.1}
  #allocation0 [shape = 'u32[]', space=smem, size = 0x4, offset = 0x4, fixed_abs, tag = 'smem constant byte address 0x4 - core index']
  #allocation1 [shape = 'u32[144,128]{1,0:T(1,128)}', space=vmem, size = 0x12000, scoped, tag = 'internal scratch']
  #allocation2 [shape = 'f32[8,128]{1,0:T(8,128)}', space=vmem, size = 0x1000, scoped, tag = 'scratch operand']
  #allocation3 [shape = 'f32[8,128]{1,0:T(8,128)}', space=vmem, size = 0x1000, scoped, tag = 'scratch operand']
  %s0 = inlined_call_operand.hbm [shape: f32[64,128], index: 0, kind: input, shape index: {}]
  %s1 = inlined_call_operand.hbm [shape: f32[64,128], index: 1, kind: input, shape index: {}]
  %s2 = inlined_call_operand.hbm [shape: f32[64,128], index: 2, kind: input, shape index: {}]
  %s3 = inlined_call_operand.hbm [shape: f32[2,8,128], index: 3, kind: output, shape index: {0}]
  %s4 = inlined_call_operand.hbm [shape: f32[2,8,128], index: 4, kind: output, shape index: {1}]
  %5 = xla_tuple %s3, %s4
  %s6 = sld [smem:[#allocation0]]
  $region73: #{tpu_custom_call.1} parent=0
    _
  %s8 = ssub.s32 1, %s6
  %s9 = scalar_select 0, %s8, %s6
  $region1: #{tpu_custom_call.1} parent=0
    #allocation4 [shape = 'u8[32768]{0}', space=vmem, size = 0x8000, scoped, tag = 'input window, operand 0']
    #allocation5 [shape = 's32[2]{0}', space=sflag, size = 0x8, scoped, tag = 'scoped memory for tpu_custom_call.1']
    #allocation6 [shape = 's32[2]{0}', space=sflag, size = 0x8, scoped, tag = 'scoped memory for tpu_custom_call.1']
    #allocation7 [shape = 'u8[32768]{0}', space=vmem, size = 0x8000, scoped, tag = 'input window, operand 1']
    #allocation8 [shape = 's32[2]{0}', space=sflag, size = 0x8, scoped, tag = 'scoped memory for tpu_custom_call.1']
    #allocation9 [shape = 'u8[32768]{0}', space=vmem, size = 0x8000, scoped, tag = 'input window, operand 2']
    #allocation10 [shape = 'u8[8192]{0}', space=vmem, size = 0x2000, scoped, tag = 'output window, operand 0']
    #allocation11 [shape = 'u8[8192]{0}', space=vmem, size = 0x2000, scoped, tag = 'output window, operand 1']
    #allocation12 [shape = 's32[2]{0}', space=sflag, size = 0x8, scoped, tag = 'scoped memory for tpu_custom_call.1']
    %10 = vsyncpa [#allocation5], 0
    %s11 = scalar_lea.sflag [#allocation5], 1
    %12 = vsyncpa %s11, 0
    %13 = vsyncpa [#allocation8], 0
    %s14 = scalar_lea.sflag [#allocation8], 1
    %15 = vsyncpa %s14, 0
    %16 = vsyncpa [#allocation6], 0
    %s17 = scalar_lea.sflag [#allocation6], 1
    %18 = vsyncpa %s17, 0
    %19 = vsyncpa [#allocation12], 0
    %s20 = scalar_lea.sflag [#allocation12], 1
    %21 = vsyncpa %s20, 0
    loop: start=0, step=1, limit=4
    $region2: #{tpu_custom_call.1} parent=1 // loop_pre_header
      _
    $region3: #{tpu_custom_call.1} parent=1 // loop_header
      %s23 = sphi 0, %s27
      %p24 = scmp.ge.s32.totalorder %s23, 4
      %s30 = sphi 0, %s42
      %s31 = sphi 0, %s38
      %s32 = sphi 0, %s30
      %s33 = sphi 0, %s31
      %s34 = sphi 0, %s32
      %s35 = sphi 0, %s33
      %s47 = sphi 0, %s49
      %s50 = sphi 0, %s47
      %s51 = sphi 0, %s50
      %s67 = sphi 0, %s51
      %s75 = sphi 0, %s77
      %s78 = sphi 0, %s75
      %s79 = sphi 0, %s78
      %s95 = sphi 0, %s79
      %s103 = sphi 0, %s105
      %s106 = sphi 0, %s103
      %s107 = sphi 0, %s106
      %s123 = sphi 0, %s107
      %s129 = sphi 0, %s131
      %s132 = sphi 0, %s129
      %s133 = sphi 0, %s132
      %s149 = sphi 0, %s133
      %s155 = sphi 0, %s157
      %s158 = sphi 0, %s155
      %s159 = sphi 0, %s158
      %s175 = sphi 0, %s159
    $region4: #{tpu_custom_call.1} parent=1 // loop_header_branch
      %26 = sbr.rel (%p24) target = $region8
    $region5: #{tpu_custom_call.1} parent=1 // loop_body
      %s28 = ssub.s32 %s23, 1
      %s29 = ssub.s32 %s23, 2
      %s36 = sadd.s32 1, %s31
      %p37 = scmp.ge.s32.totalorder %s36, 1
      %s38 = scalar_select %p37, 0, %s36
      %s39 = sadd.s32 1, %s30
      %s40 = scalar_select %p37, %s39, %s30
      %p41 = scmp.ge.s32.totalorder %s40, 2
      %s42 = scalar_select %p41, 0, %s40
      %s43 = sadd.s32 %s30, %s31
      %s44 = sadd.s32 %s42, %s38
      %s45 = ssub.s32 %s43, %s44
      %p46 = scmp.eq.s32.totalorder %s45, 0
      %s48 = sadd.s32 %s47, 1
      %s49 = scalar_select %p46, %s47, %s48
      %p52 = pneg %p46
      %p53 = scmp.eq.s32.totalorder %s23, 1
      %p54 = por %p52, %p53
      %p55 = scmp.ne.s32.totalorder %s47, %s50
      %p56 = scmp.eq.s32.totalorder %s23, 0
      %p57 = por %p55, %p56
      %p58 = scmp.ne.s32.totalorder %s47, %s50
      %p59 = scmp.eq.s32.totalorder %s28, 1
      %p60 = por %p58, %p59
      %p61 = scmp.ne.s32.totalorder %s50, %s51
      %p62 = scmp.eq.s32.totalorder %s28, 0
      %p63 = por %p61, %p62
      %p64 = scmp.ne.s32.totalorder %s50, %s51
      %p65 = scmp.eq.s32.totalorder %s29, 1
      %p66 = por %p64, %p65
      %p68 = scmp.ne.s32.totalorder %s51, %s67
      %p69 = scmp.eq.s32.totalorder %s29, 0
      %p70 = por %p68, %p69
      %s71 = sadd.s32 %s30, %s31
      %s72 = sadd.s32 %s42, %s38
      %s73 = ssub.s32 %s71, %s72
      %p74 = scmp.eq.s32.totalorder %s73, 0
      %s76 = sadd.s32 %s75, 1
      %s77 = scalar_select %p74, %s75, %s76
      %p80 = pneg %p74
      %p81 = scmp.eq.s32.totalorder %s23, 1
      %p82 = por %p80, %p81
      %p83 = scmp.ne.s32.totalorder %s75, %s78
      %p84 = scmp.eq.s32.totalorder %s23, 0
      %p85 = por %p83, %p84
      %p86 = scmp.ne.s32.totalorder %s75, %s78
      %p87 = scmp.eq.s32.totalorder %s28, 1
      %p88 = por %p86, %p87
      %p89 = scmp.ne.s32.totalorder %s78, %s79
      %p90 = scmp.eq.s32.totalorder %s28, 0
      %p91 = por %p89, %p90
      %p92 = scmp.ne.s32.totalorder %s78, %s79
      %p93 = scmp.eq.s32.totalorder %s29, 1
      %p94 = por %p92, %p93
      %p96 = scmp.ne.s32.totalorder %s79, %s95
      %p97 = scmp.eq.s32.totalorder %s29, 0
      %p98 = por %p96, %p97
      %s99 = sadd.s32 %s30, %s31
      %s100 = sadd.s32 %s42, %s38
      %s101 = ssub.s32 %s99, %s100
      %p102 = scmp.eq.s32.totalorder %s101, 0
      %s104 = sadd.s32 %s103, 1
      %s105 = scalar_select %p102, %s103, %s104
      %p108 = pneg %p102
      %p109 = scmp.eq.s32.totalorder %s23, 1
      %p110 = por %p108, %p109
      %p111 = scmp.ne.s32.totalorder %s103, %s106
      %p112 = scmp.eq.s32.totalorder %s23, 0
      %p113 = por %p111, %p112
      %p114 = scmp.ne.s32.totalorder %s103, %s106
      %p115 = scmp.eq.s32.totalorder %s28, 1
      %p116 = por %p114, %p115
      %p117 = scmp.ne.s32.totalorder %s106, %s107
      %p118 = scmp.eq.s32.totalorder %s28, 0
      %p119 = por %p117, %p118
      %p120 = scmp.ne.s32.totalorder %s106, %s107
      %p121 = scmp.eq.s32.totalorder %s29, 1
      %p122 = por %p120, %p121
      %p124 = scmp.ne.s32.totalorder %s107, %s123
      %p125 = scmp.eq.s32.totalorder %s29, 0
      %p126 = por %p124, %p125
      %s127 = ssub.s32 %s30, %s42
      %p128 = scmp.eq.s32.totalorder %s127, 0
      %s130 = sadd.s32 %s129, 1
      %s131 = scalar_select %p128, %s129, %s130
      %p134 = pneg %p128
      %p135 = scmp.eq.s32.totalorder %s23, 1
      %p136 = por %p134, %p135
      %p137 = scmp.ne.s32.totalorder %s129, %s132
      %p138 = scmp.eq.s32.totalorder %s23, 0
      %p139 = por %p137, %p138
      %p140 = scmp.ne.s32.totalorder %s129, %s132
      %p141 = scmp.eq.s32.totalorder %s28, 1
      %p142 = por %p140, %p141
      %p143 = scmp.ne.s32.totalorder %s132, %s133
      %p144 = scmp.eq.s32.totalorder %s28, 0
      %p145 = por %p143, %p144
      %p146 = scmp.ne.s32.totalorder %s132, %s133
      %p147 = scmp.eq.s32.totalorder %s29, 1
      %p148 = por %p146, %p147
      %p150 = scmp.ne.s32.totalorder %s133, %s149
      %p151 = scmp.eq.s32.totalorder %s29, 0
      %p152 = por %p150, %p151
      %s153 = ssub.s32 %s30, %s42
      %p154 = scmp.eq.s32.totalorder %s153, 0
      %s156 = sadd.s32 %s155, 1
      %s157 = scalar_select %p154, %s155, %s156
      %p160 = pneg %p154
      %p161 = scmp.eq.s32.totalorder %s23, 1
      %p162 = por %p160, %p161
      %p163 = scmp.ne.s32.totalorder %s155, %s158
      %p164 = scmp.eq.s32.totalorder %s23, 0
      %p165 = por %p163, %p164
      %p166 = scmp.ne.s32.totalorder %s155, %s158
      %p167 = scmp.eq.s32.totalorder %s28, 1
      %p168 = por %p166, %p167
      %p169 = scmp.ne.s32.totalorder %s158, %s159
      %p170 = scmp.eq.s32.totalorder %s28, 0
      %p171 = por %p169, %p170
      %p172 = scmp.ne.s32.totalorder %s158, %s159
      %p173 = scmp.eq.s32.totalorder %s29, 1
      %p174 = por %p172, %p173
      %p176 = scmp.ne.s32.totalorder %s159, %s175
      %p177 = scmp.eq.s32.totalorder %s29, 0
      %p178 = por %p176, %p177
      %p179 = scmp.le.s32.totalorder 1, %s23
      %p180 = scmp.lt.s32.totalorder %s23, 3
      %p181 = pnand %p179, %p180
      %p182 = pneg %p181
      // Predicated region
      $region9: #{tpu_custom_call.1} parent=5 // pred_check
        _
      $region10: #{tpu_custom_call.1} parent=5 // pred_check_branch
        %184 = sbr.rel (%p181) target = $region12
      $region11: #{tpu_custom_call.1} parent=5 // pred_region
        %s185 = ssub.s32 %s23, 1
      $region12: #{tpu_custom_call.1} parent=5 // pred_fallthru
        _
      %p186 = scmp.lt.s32.totalorder %s23, 2
      // Predicated region
      $region13: #{tpu_custom_call.1} parent=5 // pred_check
        %p187 = pneg %p186
      $region14: #{tpu_custom_call.1} parent=5 // pred_check_branch
        %189 = sbr.rel (%p187) target = $region16
      $region15: #{tpu_custom_call.1} parent=5 // pred_region
        // Predicated region
        $region17: #{tpu_custom_call.1} parent=15 // pred_check
          %p190 = pneg %p57
        $region18: #{tpu_custom_call.1} parent=15 // pred_check_branch
          %192 = sbr.rel (%p190) target = $region20
        $region19: #{tpu_custom_call.1} parent=15 // pred_region
          %s193 = sand.u32 %s47, 1
          %s194 = scalar_lea.sflag [#allocation5], %s193
          %s195 = sand.u32 %s47, 1
          %s196 = smul.addr %s195, 32
          %s197 = scalar_lea.vmem [#allocation4], %s196
          %s198 = sadd.s32 %s30, %s31
          %s199 = smul.u32 4, %s198
          %s201 = ssub.s32 512, 512
          %202 = vsyncadd %s194, %s201
          %s203 = smul.addr %s199, 128
          %s204 = scalar_lea.hbm %s0, %s203
          %s205 = sshll.u32 %s197, 4
          %s206 = int_to_ptr.vmem [resolvable:$true] %s205
          %211 = dma.hbm_to_vmem [thread:$0]  %s204, 512, %s206, %s194, 128, 128, 8
        $region20: #{tpu_custom_call.1} parent=15 // pred_fallthru
          _
        // Predicated region
        $region21: #{tpu_custom_call.1} parent=15 // pred_check
          %p212 = pneg %p85
        $region22: #{tpu_custom_call.1} parent=15 // pred_check_branch
          %214 = sbr.rel (%p212) target = $region24
        $region23: #{tpu_custom_call.1} parent=15 // pred_region
          %s215 = sand.u32 %s23, 1
          %s216 = scalar_lea.sflag [#allocation8], %s215
          %s217 = sand.u32 %s75, 1
          %s218 = smul.addr %s217, 32
          %s219 = scalar_lea.vmem [#allocation7], %s218
          %s220 = sadd.s32 %s30, %s31
          %s221 = smul.u32 4, %s220
          %s223 = ssub.s32 512, 512
          %224 = vsyncadd %s216, %s223
          %s225 = smul.addr %s221, 128
          %s226 = scalar_lea.hbm %s1, %s225
          %s227 = sshll.u32 %s219, 4
          %s228 = int_to_ptr.vmem [resolvable:$true] %s227
          %233 = dma.hbm_to_vmem [thread:$0]  %s226, 512, %s228, %s216, 128, 128, 8
        $region24: #{tpu_custom_call.1} parent=15 // pred_fallthru
          _
        // Predicated region
        $region25: #{tpu_custom_call.1} parent=15 // pred_check
          %p234 = pneg %p113
        $region26: #{tpu_custom_call.1} parent=15 // pred_check_branch
          %236 = sbr.rel (%p234) target = $region28
        $region27: #{tpu_custom_call.1} parent=15 // pred_region
          %s237 = sand.u32 %s23, 1
          %s238 = scalar_lea.sflag [#allocation8], %s237
          %s239 = sand.u32 %s103, 1
          %s240 = smul.addr %s239, 32
          %s241 = scalar_lea.vmem [#allocation9], %s240
          %s242 = sadd.s32 %s30, %s31
          %s243 = smul.u32 4, %s242
          %s245 = ssub.s32 512, 512
          %246 = vsyncadd %s238, %s245
          %s247 = smul.addr %s243, 128
          %s248 = scalar_lea.hbm %s2, %s247
          %s249 = sshll.u32 %s241, 4
          %s250 = int_to_ptr.vmem [resolvable:$true] %s249
          %255 = dma.hbm_to_vmem [thread:$0]  %s248, 512, %s250, %s238, 128, 128, 8
        $region28: #{tpu_custom_call.1} parent=15 // pred_fallthru
          _
      $region16: #{tpu_custom_call.1} parent=5 // pred_fallthru
        _
      %p256 = scmp.le.s32.totalorder 1, %s23
      %p257 = scmp.lt.s32.totalorder %s23, 3
      %p258 = pnand %p256, %p257
      %p259 = pneg %p258
      // Predicated region
      $region29: #{tpu_custom_call.1} parent=5 // pred_check
        _
      $region30: #{tpu_custom_call.1} parent=5 // pred_check_branch
        %261 = sbr.rel (%p258) target = $region32
      $region31: #{tpu_custom_call.1} parent=5 // pred_region
        %s262 = ssub.s32 %s23, 1
        %s263 = sand.u32 %s50, 1
        %s264 = scalar_lea.sflag [#allocation5], %s263
        %s265 = sand.u32 %s50, 1
        %s266 = smul.addr %s265, 32
        %s267 = scalar_lea.vmem [#allocation4], %s266
        // Predicated region
        $region33: #{tpu_custom_call.1} parent=31 // pred_check
          %p268 = pneg %p63
        $region34: #{tpu_custom_call.1} parent=31 // pred_check_branch
          %270 = sbr.rel (%p268) target = $region36
        $region35: #{tpu_custom_call.1} parent=31 // pred_region
          %271 = dma.done %s264, 512
        $region36: #{tpu_custom_call.1} parent=31 // pred_fallthru
          _
        %s272 = sand.u32 %s28, 1
        %s273 = scalar_lea.sflag [#allocation8], %s272
        %s274 = sand.u32 %s78, 1
        %s275 = smul.addr %s274, 32
        %s276 = scalar_lea.vmem [#allocation7], %s275
        // Predicated region
        $region37: #{tpu_custom_call.1} parent=31 // pred_check
          %p277 = pneg %p91
        $region38: #{tpu_custom_call.1} parent=31 // pred_check_branch
          %279 = sbr.rel (%p277) target = $region40
        $region39: #{tpu_custom_call.1} parent=31 // pred_region
          %280 = dma.done %s273, 512
        $region40: #{tpu_custom_call.1} parent=31 // pred_fallthru
          _
        %s281 = sand.u32 %s28, 1
        %s282 = scalar_lea.sflag [#allocation8], %s281
        %s283 = sand.u32 %s106, 1
        %s284 = smul.addr %s283, 32
        %s285 = scalar_lea.vmem [#allocation9], %s284
        // Predicated region
        $region41: #{tpu_custom_call.1} parent=31 // pred_check
          %p286 = pneg %p119
        $region42: #{tpu_custom_call.1} parent=31 // pred_check_branch
          %288 = sbr.rel (%p286) target = $region44
        $region43: #{tpu_custom_call.1} parent=31 // pred_region
          %289 = dma.done %s282, 512
        $region44: #{tpu_custom_call.1} parent=31 // pred_fallthru
          _
        %s290 = sand.u32 %s50, 1
        %s291 = scalar_lea.sflag [#allocation5], %s290
        %s292 = sand.u32 %s50, 1
        %s293 = smul.addr %s292, 32
        %s294 = scalar_lea.vmem [#allocation4], %s293
        %p295 = pneg %p63
        %p296 = pneg %p60
        %s297 = sand.u32 %s28, 1
        %s298 = scalar_lea.sflag [#allocation8], %s297
        %s299 = sand.u32 %s78, 1
        %s300 = smul.addr %s299, 32
        %s301 = scalar_lea.vmem [#allocation7], %s300
        %p302 = pneg %p91
        %p303 = pneg %p88
        %s304 = sand.u32 %s28, 1
        %s305 = scalar_lea.sflag [#allocation8], %s304
        %s306 = sand.u32 %s106, 1
        %s307 = smul.addr %s306, 32
        %s308 = scalar_lea.vmem [#allocation9], %s307
        %p309 = pneg %p119
        %p310 = pneg %p116
        %p311 = pneg %p145
        %p312 = pneg %p142
        %s313 = sand.u32 %s132, 1
        %s314 = scalar_lea.sflag [#allocation6], %s313
        %s315 = sand.u32 %s132, 1
        %s316 = smul.addr %s315, 8
        %s317 = scalar_lea.vmem [#allocation10], %s316
        %p318 = pneg %p171
        %p319 = pneg %p168
        %s320 = sand.u32 %s158, 1
        %s321 = scalar_lea.sflag [#allocation12], %s320
        %s322 = sand.u32 %s158, 1
        %s323 = smul.addr %s322, 8
        %s324 = scalar_lea.vmem [#allocation11], %s323
        %s325 = sadd.s32 %s32, %s33
        %s326 = smul.u32 4, %s325
        %s327 = sadd.s32 %s32, %s33
        %s328 = smul.u32 4, %s327
        %s329 = sadd.s32 %s32, %s33
        %s330 = smul.u32 4, %s329
        %p331 = scmp.eq.s32.totalorder %s33, 0
        // Predicated region
        $region45: #{tpu_custom_call.1} parent=31 // pred_check
          %p332 = pneg %p331
        $region46: #{tpu_custom_call.1} parent=31 // pred_check_branch
          %334 = sbr.rel (%p332) target = $region48
        $region47: #{tpu_custom_call.1} parent=31 // pred_region
          %335 = vst [vmem:[#allocation2] sm:$0xff] 0.0
          %336 = vst [vmem:[#allocation3] sm:$0xff] 0.0
        $region48: #{tpu_custom_call.1} parent=31 // pred_fallthru
          _
        %v337 = vld [vmem:[%s267] sm:$0xff]
        %v338 = vld [vmem:[%s267 + $0x8] sm:$0xff]
        %v339 = vld [vmem:[%s267 + $0x10] sm:$0xff]
        %v340 = vld [vmem:[%s267 + $0x18] sm:$0xff]
        %v341 = vld [vmem:[%s276] sm:$0xff]
        %v342 = vld [vmem:[%s276 + $0x8] sm:$0xff]
        %v343 = vld [vmem:[%s276 + $0x10] sm:$0xff]
        %v344 = vld [vmem:[%s276 + $0x18] sm:$0xff]
        %v345 = vld [vmem:[%s285] sm:$0xff]
        %v346 = vld [vmem:[%s285 + $0x8] sm:$0xff]
        %v347 = vld [vmem:[%s285 + $0x10] sm:$0xff]
        %v348 = vld [vmem:[%s285 + $0x18] sm:$0xff]
        %v349 = vsub.f32 %v337, %v341
        %v350 = vsub.f32 %v338, %v342
        %v351 = vsub.f32 %v339, %v343
        %v352 = vsub.f32 %v340, %v344
        %v353 = vmul.f32 %v345, %v349
        %v354 = vmul.f32 %v346, %v350
        %v355 = vmul.f32 %v347, %v351
        %v356 = vmul.f32 %v348, %v352
        %v357 = vmul.f32 %v353, %v349
        %v358 = vmul.f32 %v354, %v350
        %v359 = vmul.f32 %v355, %v351
        %v360 = vmul.f32 %v356, %v352
        %v361 = vld [vmem:[#allocation2] sm:$0xff]
        %v362 = vadd.f32 %v357, %v358
        %v363 = vadd.f32 %v362, %v359
        %v364 = vadd.f32 %v363, %v360
        %v365 = vadd.f32 %v361, %v364
        %366 = vst [vmem:[#allocation2] sm:$0xff] %v365
        %v367 = vld [vmem:[#allocation3] sm:$0xff]
        %v368 = vadd.f32 %v345, %v346
        %v369 = vadd.f32 %v368, %v347
        %v370 = vadd.f32 %v369, %v348
        %v371 = vadd.f32 %v367, %v370
        %372 = vst [vmem:[#allocation3] sm:$0xff] %v371
        // Predicated region
        $region49: #{tpu_custom_call.1} parent=31 // pred_check
          %p373 = pneg %p331
        $region50: #{tpu_custom_call.1} parent=31 // pred_check_branch
          %375 = sbr.rel (%p373) target = $region52
        $region51: #{tpu_custom_call.1} parent=31 // pred_region
          %v376 = vld [vmem:[#allocation2] sm:$0xff]
          %377 = vst [vmem:[%s317] sm:$0xff] %v376
          %v378 = vld [vmem:[#allocation3] sm:$0xff]
          %379 = vst [vmem:[%s324] sm:$0xff] %v378
        $region52: #{tpu_custom_call.1} parent=31 // pred_fallthru
          _
        %s380 = sand.u32 %s132, 1
        %s381 = scalar_lea.sflag [#allocation6], %s380
        %s382 = sand.u32 %s132, 1
        %s383 = smul.addr %s382, 8
        %s384 = scalar_lea.vmem [#allocation10], %s383
        %s385 = sand.u32 %s158, 1
        %s386 = scalar_lea.sflag [#allocation12], %s385
        %s387 = sand.u32 %s158, 1
        %s388 = smul.addr %s387, 8
        %s389 = scalar_lea.vmem [#allocation11], %s388
        // Predicated region
        $region53: #{tpu_custom_call.1} parent=31 // pred_check
          %p390 = pneg %p142
        $region54: #{tpu_custom_call.1} parent=31 // pred_check_branch
          %392 = sbr.rel (%p390) target = $region56
        $region55: #{tpu_custom_call.1} parent=31 // pred_region
          %s394 = ssub.s32 128, 128
          %395 = vsyncadd %s381, %s394
          %s396 = smul.addr %s32, 128
          %s397 = scalar_lea.hbm %s3, %s396
          %s399 = sshll.u32 %s384, 4
          %s400 = int_to_ptr.vmem [resolvable:$true] %s399
          %402 = dma.vmem_to_hbm [thread:$0]  %s400, 128, %s397, %s381
        $region56: #{tpu_custom_call.1} parent=31 // pred_fallthru
          _
        // Predicated region
        $region57: #{tpu_custom_call.1} parent=31 // pred_check
          %p403 = pneg %p168
        $region58: #{tpu_custom_call.1} parent=31 // pred_check_branch
          %405 = sbr.rel (%p403) target = $region60
        $region59: #{tpu_custom_call.1} parent=31 // pred_region
          %s407 = ssub.s32 128, 128
          %408 = vsyncadd %s386, %s407
          %s409 = smul.addr %s32, 128
          %s410 = scalar_lea.hbm %s4, %s409
          %s412 = sshll.u32 %s389, 4
          %s413 = int_to_ptr.vmem [resolvable:$true] %s412
          %415 = dma.vmem_to_hbm [thread:$0]  %s413, 128, %s410, %s386
        $region60: #{tpu_custom_call.1} parent=31 // pred_fallthru
          _
      $region32: #{tpu_custom_call.1} parent=5 // pred_fallthru
        _
      %p416 = scmp.le.s32.totalorder 2, %s23
      // Predicated region
      $region61: #{tpu_custom_call.1} parent=5 // pred_check
        %p417 = pneg %p416
      $region62: #{tpu_custom_call.1} parent=5 // pred_check_branch
        %419 = sbr.rel (%p417) target = $region64
      $region63: #{tpu_custom_call.1} parent=5 // pred_region
        %s420 = ssub.s32 %s23, 2
        // Predicated region
        $region65: #{tpu_custom_call.1} parent=63 // pred_check
          %p421 = pneg %p148
        $region66: #{tpu_custom_call.1} parent=63 // pred_check_branch
          %423 = sbr.rel (%p421) target = $region68
        $region67: #{tpu_custom_call.1} parent=63 // pred_region
          %s424 = sand.u32 %s133, 1
          %s425 = scalar_lea.sflag [#allocation6], %s424
          %s426 = sand.u32 %s133, 1
          %s427 = smul.addr %s426, 8
          %s428 = scalar_lea.vmem [#allocation10], %s427
          %429 = dma.done %s425, 128
        $region68: #{tpu_custom_call.1} parent=63 // pred_fallthru
          _
        // Predicated region
        $region69: #{tpu_custom_call.1} parent=63 // pred_check
          %p430 = pneg %p174
        $region70: #{tpu_custom_call.1} parent=63 // pred_check_branch
          %432 = sbr.rel (%p430) target = $region72
        $region71: #{tpu_custom_call.1} parent=63 // pred_region
          %s433 = sand.u32 %s159, 1
          %s434 = scalar_lea.sflag [#allocation12], %s433
          %s435 = sand.u32 %s159, 1
          %s436 = smul.addr %s435, 8
          %s437 = scalar_lea.vmem [#allocation11], %s436
          %438 = dma.done %s434, 128
        $region72: #{tpu_custom_call.1} parent=63 // pred_fallthru
          _
      $region64: #{tpu_custom_call.1} parent=5 // pred_fallthru
        _
    $region6: #{tpu_custom_call.1} parent=1 // loop_footer
      %s27 = sadd.s32 1, %s23
    $region7: #{tpu_custom_call.1} parent=1 // loop_footer_branch
      %22 = sbr.rel target = $region3
    $region8: #{tpu_custom_call.1} parent=1 // loop_exit
      _
    %439 = vsyncpa [#allocation5], 1
    %s440 = scalar_lea.sflag [#allocation5], 1
    %441 = vsyncpa %s440, 1
    %442 = vsyncpa [#allocation8], 1
    %s443 = scalar_lea.sflag [#allocation8], 1
    %444 = vsyncpa %s443, 1
    %445 = vsyncpa [#allocation6], 1
    %s446 = scalar_lea.sflag [#allocation6], 1
    %447 = vsyncpa %s446, 1
    %448 = vsyncpa [#allocation12], 1
    %s449 = scalar_lea.sflag [#allocation12], 1
    %450 = vsyncpa %s449, 1

</llo_original>
